<compile_context>
chip_gen: v6e
topology: v6e:2x2x1
jax: 0.10.0
libtpu: 0.0.40
codegen_flags: <defaults>
</compile_context>

<pallas_src>
import functools
import math

import jax
import jax.numpy as jnp
from jax.experimental import pallas as pl
from jax.experimental.pallas import tpu as pltpu


_INV_SQRT2 = 0.7071067811865476


def _lm_head_kernel(x_ref, w1_ref, b1_ref, g_ref, beta_ref, w2_ref, b2_ref,
                    o_ref, act_ref, *, eps):
    # x_ref:   (tm, D)  row tile of flattened features (compute dtype)
    # w1_ref:  (D, D)   first Linear weight (in x out), constant across grid
    # b1_ref:  (1, D)   first Linear bias (f32)
    # g_ref:   (1, D)   LayerNorm gamma (f32)
    # beta_ref:(1, D)   LayerNorm beta (f32)
    # w2_ref:  (D, tn)  vocab tile of second Linear weight (in x out)
    # b2_ref:  (1, tn)  vocab tile of second Linear bias (f32)
    # o_ref:   (tm, tn) output tile
    # act_ref: (tm, D)  VMEM scratch caching GELU(LN(Linear1(x)))
    j = pl.program_id(1)  # vocab-tile index (innermost, "arbitrary")

    @pl.when(j == 0)
    def _():
        # Linear 1 on the MXU; operands already in the compute dtype, f32 acc.
        h = jnp.dot(x_ref[...], w1_ref[...], preferred_element_type=jnp.float32)
        h = h + b1_ref[...].astype(jnp.float32)

        # LayerNorm over the last dim (two-pass variance, PyTorch default eps),
        # all math in f32.
        mean = jnp.mean(h, axis=-1, keepdims=True)
        hc = h - mean
        var = jnp.mean(hc * hc, axis=-1, keepdims=True)
        hn = hc * jax.lax.rsqrt(var + eps)
        hn = hn * g_ref[...].astype(jnp.float32) + beta_ref[...].astype(jnp.float32)

        # Exact (erf-based) GELU, matching torch.nn.GELU() default.
        ge = 0.5 * hn * (1.0 + jax.lax.erf(hn * jnp.float32(_INV_SQRT2)))

        # Cache (in compute dtype) for all vocab tiles of this row tile.
        act_ref[...] = ge.astype(act_ref.dtype)

    # Linear 2 (vocab tile) on the cached activations.
    out = jnp.dot(act_ref[...], w2_ref[...], preferred_element_type=jnp.float32)
    out = out + b2_ref[...].astype(jnp.float32)
    o_ref[...] = out.astype(o_ref.dtype)


def _round_up(x, m):
    return (x + m - 1) // m * m


def roberta_lm_head(features, params, *, row_tile=None, vocab_tile=None,
                    eps=1e-5, compute_dtype=jnp.bfloat16, out_dtype=None):
    """features: (batch, seq, embed_dim) -> (batch, seq, output_dim).

    compute_dtype: dtype fed to the MXU for both matmuls and for the cached
      GELU activations.  Defaults to bf16 (2x+ MXU rate, half the w2 stream);
      pass jnp.float32 for bit-accurate f32 semantics (tolerance vs a PyTorch
      f32 reference with bf16 compute is ~1e-2 relative).
    out_dtype: logits dtype.  Defaults to features.dtype; pass jnp.bfloat16 on
      v6e/v7x to halve the N*V writeback (the remaining HBM bound there).
    """
    w1, b1, gamma, beta, w2, b2 = (params["w1"], params["b1"], params["gamma"],
                                   params["beta"], params["w2"], params["b2"])
    B, S, D = features.shape
    V = w2.shape[1]
    N = B * S

    if compute_dtype is None:
        compute_dtype = w1.dtype
    compute_dtype = jnp.dtype(compute_dtype)
    out_dtype = jnp.dtype(out_dtype) if out_dtype is not None else features.dtype
    act_dtype = compute_dtype

    # --- Generation-aware VMEM budget ----------------------------------------
    try:
        vmem_cap = int(pltpu.get_tpu_info().vmem_capacity_bytes)
    except Exception:
        vmem_cap = 64 << 20                        # conservative (v7x per-TC)
    cap = max(vmem_cap - (16 << 20), 32 << 20)     # leave compiler headroom

    if row_tile is None:
        row_tile = 1024                            # w2 intensity = 2*tm FLOP/B
    if vocab_tile is None:
        vocab_tile = 2048 if vmem_cap >= (96 << 20) else 1024

    # --- Row tiling: tm multiple of 8 (sublane); rows zero-padded. -----------
    tm = _round_up(min(row_tile, _round_up(N, 8)), 8)
    # --- Vocab tiling: tn multiple of 128 (lane-dense stores); V is padded ---
    # to a multiple of tn so huge / irregular vocabs never become one block.
    tn = max(128, min(_round_up(vocab_tile, 128), _round_up(V, 128)))

    def _nbytes(shape, dt):
        return math.prod(shape) * jnp.dtype(dt).itemsize

    def _vmem_est(tm_, tn_):
        e = 2 * _nbytes((tm_, D), compute_dtype)       # x tile (double-buffered)
        e += 2 * _nbytes((D, D), compute_dtype)        # w1 (worst case 2 bufs)
        e += 2 * 3 * _nbytes((1, D), jnp.float32)      # b1, gamma, beta
        e += 2 * _nbytes((D, tn_), compute_dtype)      # w2 vocab tile
        e += 2 * _nbytes((1, tn_), jnp.float32)        # b2 vocab tile
        e += 2 * _nbytes((tm_, tn_), out_dtype)        # output tile
        e += _nbytes((tm_, D), act_dtype)              # act scratch (single)
        return e

    slack = 8 << 20
    while _vmem_est(tm, tn) + slack > cap and tn > 512:
        tn = max(512, ((tn // 2) // 128) * 128)
    while _vmem_est(tm, tn) + slack > cap and tm > 128:
        tm = max(128, _round_up(tm // 2, 8))

    n_pad = _round_up(N, tm)
    v_pad = _round_up(V, tn)
    grid = (n_pad // tm, v_pad // tn)
    vmem_limit = int(min(max(_vmem_est(tm, tn) + slack, 32 << 20), cap))

    # --- Operand prep (casts/padding done once, outside the kernel). ---------
    x2d = features.reshape(N, D).astype(compute_dtype)
    if n_pad != N:
        x2d = jnp.pad(x2d, ((0, n_pad - N), (0, 0)))

    w1c = w1.astype(compute_dtype)
    w2c = w2.astype(compute_dtype)
    b1_2d = b1.reshape(1, D).astype(jnp.float32)
    g_2d = gamma.reshape(1, D).astype(jnp.float32)
    be_2d = beta.reshape(1, D).astype(jnp.float32)
    b2_2d = b2.reshape(1, V).astype(jnp.float32)
    if v_pad != V:
        w2c = jnp.pad(w2c, ((0, 0), (0, v_pad - V)))
        b2_2d = jnp.pad(b2_2d, ((0, 0), (0, v_pad - V)))

    def _build_and_run(single_buffer_consts):
        # Grid-constant operands don't need double-buffering; Buffered(1)
        # frees their second VMEM buffer where supported.
        const_kw = ({"pipeline_mode": pl.Buffered(1)}
                    if single_buffer_consts else {})
        in_specs = [
            pl.BlockSpec((tm, D), lambda i, j: (i, 0)),              # x rows
            pl.BlockSpec((D, D), lambda i, j: (0, 0), **const_kw),   # w1
            pl.BlockSpec((1, D), lambda i, j: (0, 0), **const_kw),   # b1
            pl.BlockSpec((1, D), lambda i, j: (0, 0), **const_kw),   # gamma
            pl.BlockSpec((1, D), lambda i, j: (0, 0), **const_kw),   # beta
            pl.BlockSpec((D, tn), lambda i, j: (0, j)),              # w2 tile
            pl.BlockSpec((1, tn), lambda i, j: (0, j)),              # b2 tile
        ]
        return pl.pallas_call(
            functools.partial(_lm_head_kernel, eps=eps),
            out_shape=jax.ShapeDtypeStruct((n_pad, v_pad), out_dtype),
            grid_spec=pltpu.PrefetchScalarGridSpec(
                num_scalar_prefetch=0,
                grid=grid,
                in_specs=in_specs,
                out_specs=pl.BlockSpec((tm, tn), lambda i, j: (i, j)),
                scratch_shapes=[pltpu.VMEM((tm, D), act_dtype)],
            ),
            compiler_params=pltpu.CompilerParams(
                dimension_semantics=("parallel", "arbitrary"),
                vmem_limit_bytes=vmem_limit,
            ),
        )(x2d, w1c, b1_2d, g_2d, be_2d, w2c, b2_2d)

    try:
        out2d = _build_and_run(True)
    except Exception:
        # pipeline_mode=pl.Buffered(1) unsupported on this jax version; fall
        # back to default double-buffering of the constant operands.
        out2d = _build_and_run(False)

    if v_pad != V:
        out2d = out2d[:, :V]
    if n_pad != N:
        out2d = out2d[:N]
    return out2d.reshape(B, S, V)


def init_params(key, embed_dim, output_dim, dtype=jnp.float32):
    k1, k2, k3, k4 = jax.random.split(key, 4)
    # Weights stored as (in_features, out_features), i.e. torch weight.T
    bound1 = 1.0 / jnp.sqrt(embed_dim)
    w1 = jax.random.uniform(k1, (embed_dim, embed_dim), dtype, -bound1, bound1)
    b1 = jax.random.uniform(k2, (embed_dim,), dtype, -bound1, bound1)
    gamma = jnp.ones((embed_dim,), dtype)
    beta = jnp.zeros((embed_dim,), dtype)
    w2 = jax.random.uniform(k3, (embed_dim, output_dim), dtype, -bound1, bound1)
    b2 = jax.random.uniform(k4, (output_dim,), dtype, -bound1, bound1)
    return dict(w1=w1, b1=b1, gamma=gamma, beta=beta, w2=w2, b2=b2)


def _reference(features, p, eps=1e-5):
    h = features @ p["w1"] + p["b1"]
    mean = jnp.mean(h, axis=-1, keepdims=True)
    var = jnp.mean((h - mean) ** 2, axis=-1, keepdims=True)
    hn = (h - mean) * jax.lax.rsqrt(var + eps) * p["gamma"] + p["beta"]
    ge = 0.5 * hn * (1.0 + jax.lax.erf(hn / jnp.sqrt(2.0)))
    return ge @ p["w2"] + p["b2"]


if __name__ == "__main__":
    key = jax.random.PRNGKey(0)

    # --- Test 1: small module-like shapes, exact f32 compute path. ----------
    batch, seq, embed_dim, output_dim = 2, 8, 32, 64
    k_x, k_p, key = jax.random.split(key, 3)
    features = jax.random.normal(k_x, (batch, seq, embed_dim), jnp.float32)
    params = init_params(k_p, embed_dim, output_dim)

    out = jax.block_until_ready(
        roberta_lm_head(features, params, compute_dtype=jnp.float32))
    ref = _reference(features, params)
    assert out.shape == (batch, seq, output_dim)
    assert jnp.allclose(out, ref, atol=1e-4, rtol=1e-4), "mismatch (test 1)"

    # --- Test 2: vocab padding (V not a multiple of 128) + multi-tile grid, -
    # f32 compute, exercises the act-scratch reuse across vocab tiles.
    batch2, seq2, d2, v2 = 2, 16, 128, 200
    k_x2, k_p2, key = jax.random.split(key, 3)
    features2 = jax.random.normal(k_x2, (batch2, seq2, d2), jnp.float32)
    params2 = init_params(k_p2, d2, v2)

    out2 = jax.block_until_ready(
        roberta_lm_head(features2, params2, row_tile=16, vocab_tile=128,
                        compute_dtype=jnp.float32))
    ref2 = _reference(features2, params2)
    assert out2.shape == (batch2, seq2, v2)
    assert jnp.allclose(out2, ref2, atol=1e-4, rtol=1e-4), "mismatch (test 2)"

    # --- Test 3: default bf16 compute path + bf16 logits (relaxed tolerance).
    batch3, seq3, d3, v3 = 2, 64, 256, 384
    k_x3, k_p3 = jax.random.split(key)
    features3 = jax.random.normal(k_x3, (batch3, seq3, d3), jnp.float32)
    params3 = init_params(k_p3, d3, v3)

    out3 = jax.block_until_ready(
        roberta_lm_head(features3, params3, row_tile=64, vocab_tile=128,
                        out_dtype=jnp.bfloat16))
    ref3 = _reference(features3, params3)
    assert out3.shape == (batch3, seq3, v3)
    assert out3.dtype == jnp.bfloat16
    assert jnp.allclose(out3.astype(jnp.float32), ref3, atol=5e-2, rtol=5e-2), \
        "mismatch (test 3, bf16 path)"

    print("KERNEL_OK")
</pallas_src>

<mosaic_0001>
module attributes {stable_mosaic.version = 11 : i64} {
  func.func @_lm_head_kernel(%arg0: i32, %arg1: i32, %arg2: memref<16x32xf32, #tpu.memory_space<vmem>>, %arg3: memref<32x32xf32, #tpu.memory_space<vmem>>, %arg4: memref<1x32xf32, #tpu.memory_space<vmem>>, %arg5: memref<1x32xf32, #tpu.memory_space<vmem>>, %arg6: memref<1x32xf32, #tpu.memory_space<vmem>>, %arg7: memref<32x128xf32, #tpu.memory_space<vmem>>, %arg8: memref<1x128xf32, #tpu.memory_space<vmem>>, %arg9: memref<16x128xf32, #tpu.memory_space<vmem>>, %arg10: memref<16x32xf32, #tpu.memory_space<vmem>>) attributes {dimension_semantics = [#tpu.dimension_semantics<parallel>, #tpu.dimension_semantics<arbitrary>], iteration_bounds = array<i64: 1, 1>, scalar_prefetch = 0 : i64, scratch_operands = 1 : i64, tpu.core_type = #tpu.core_type<tc>, window_params = [{transform_indices = @transform_0, window_bounds = array<i64: 16, 32>}, {pipeline_mode = #tpu.pipeline_mode<synchronous>, transform_indices = @transform_1, window_bounds = array<i64: 32, 32>}, {pipeline_mode = #tpu.pipeline_mode<synchronous>, transform_indices = @transform_2, window_bounds = array<i64: 1, 32>}, {pipeline_mode = #tpu.pipeline_mode<synchronous>, transform_indices = @transform_3, window_bounds = array<i64: 1, 32>}, {pipeline_mode = #tpu.pipeline_mode<synchronous>, transform_indices = @transform_4, window_bounds = array<i64: 1, 32>}, {transform_indices = @transform_5, window_bounds = array<i64: 32, 128>}, {transform_indices = @transform_6, window_bounds = array<i64: 1, 128>}, {transform_indices = @transform_7, window_bounds = array<i64: 16, 128>}]} {
    %c0_i32 = arith.constant 0 : i32
    %0 = arith.cmpi eq, %arg1, %c0_i32 : i32
    %1 = arith.extui %0 : i1 to i32
    %c0_i32_0 = arith.constant 0 : i32
    %2 = arith.cmpi ne, %1, %c0_i32_0 : i32
    scf.if %2 {
      %c0_8 = arith.constant 0 : index
      %c0_9 = arith.constant 0 : index
      %10 = vector.load %arg2[%c0_8, %c0_9] : memref<16x32xf32, #tpu.memory_space<vmem>>, vector<16x32xf32>
      %c0_10 = arith.constant 0 : index
      %c0_11 = arith.constant 0 : index
      %11 = vector.load %arg3[%c0_10, %c0_11] : memref<32x32xf32, #tpu.memory_space<vmem>>, vector<32x32xf32>
      %cst_12 = arith.constant dense<0.000000e+00> : vector<16x32xf32>
      %12 = tpu.matmul %10, %11, %cst_12 {dimension_numbers = #tpu.dot_dimension_numbers<[1], [0], [0], [1], [0, 0, 1, 1], [], []>} : vector<16x32xf32>, vector<32x32xf32>, vector<16x32xf32> -> vector<16x32xf32>
      %c0_13 = arith.constant 0 : index
      %c0_14 = arith.constant 0 : index
      %13 = vector.load %arg4[%c0_13, %c0_14] : memref<1x32xf32, #tpu.memory_space<vmem>>, vector<1x32xf32>
      %14 = vector.broadcast %13 : vector<1x32xf32> to vector<16x32xf32>
      %15 = arith.addf %12, %14 : vector<16x32xf32>
      %cst_15 = arith.constant dense<0.000000e+00> : vector<16xf32>
      %16 = vector.multi_reduction <add>, %15, %cst_15 [1] : vector<16x32xf32> to vector<16xf32>
      %17 = vector.shape_cast %16 : vector<16xf32> to vector<16x1xf32>
      %cst_16 = arith.constant 3.200000e+01 : f32
      %18 = vector.broadcast %cst_16 : f32 to vector<16x1xf32>
      %19 = arith.divf %17, %18 : vector<16x1xf32>
      %20 = vector.broadcast %19 : vector<16x1xf32> to vector<16x32xf32>
      %21 = arith.subf %15, %20 : vector<16x32xf32>
      %22 = arith.mulf %21, %21 : vector<16x32xf32>
      %cst_17 = arith.constant dense<0.000000e+00> : vector<16xf32>
      %23 = vector.multi_reduction <add>, %22, %cst_17 [1] : vector<16x32xf32> to vector<16xf32>
      %24 = vector.shape_cast %23 : vector<16xf32> to vector<16x1xf32>
      %cst_18 = arith.constant 3.200000e+01 : f32
      %25 = vector.broadcast %cst_18 : f32 to vector<16x1xf32>
      %26 = arith.divf %24, %25 : vector<16x1xf32>
      %cst_19 = arith.constant 9.99999974E-6 : f32
      %27 = vector.broadcast %cst_19 : f32 to vector<16x1xf32>
      %28 = arith.addf %26, %27 : vector<16x1xf32>
      %29 = math.rsqrt %28 : vector<16x1xf32>
      %30 = vector.broadcast %29 : vector<16x1xf32> to vector<16x32xf32>
      %31 = arith.mulf %21, %30 : vector<16x32xf32>
      %c0_20 = arith.constant 0 : index
      %c0_21 = arith.constant 0 : index
      %32 = vector.load %arg5[%c0_20, %c0_21] : memref<1x32xf32, #tpu.memory_space<vmem>>, vector<1x32xf32>
      %33 = vector.broadcast %32 : vector<1x32xf32> to vector<16x32xf32>
      %34 = arith.mulf %31, %33 : vector<16x32xf32>
      %c0_22 = arith.constant 0 : index
      %c0_23 = arith.constant 0 : index
      %35 = vector.load %arg6[%c0_22, %c0_23] : memref<1x32xf32, #tpu.memory_space<vmem>>, vector<1x32xf32>
      %36 = vector.broadcast %35 : vector<1x32xf32> to vector<16x32xf32>
      %37 = arith.addf %34, %36 : vector<16x32xf32>
      %cst_24 = arith.constant 5.000000e-01 : f32
      %38 = vector.broadcast %cst_24 : f32 to vector<16x32xf32>
      %39 = arith.mulf %38, %37 : vector<16x32xf32>
      %cst_25 = arith.constant 0.707106769 : f32
      %40 = vector.broadcast %cst_25 : f32 to vector<16x32xf32>
      %41 = arith.mulf %37, %40 : vector<16x32xf32>
      %42 = math.erf %41 : vector<16x32xf32>
      %cst_26 = arith.constant 1.000000e+00 : f32
      %43 = vector.broadcast %cst_26 : f32 to vector<16x32xf32>
      %44 = arith.addf %43, %42 : vector<16x32xf32>
      %45 = arith.mulf %39, %44 : vector<16x32xf32>
      %c0_27 = arith.constant 0 : index
      %c0_28 = arith.constant 0 : index
      %46 = vector.load %arg10[%c0_27, %c0_28] : memref<16x32xf32, #tpu.memory_space<vmem>>, vector<16x32xf32>
      tpu.vector_store %arg10[%c0_27, %c0_28], %45 {strides = array<i32>} : memref<16x32xf32, #tpu.memory_space<vmem>>, vector<16x32xf32>,
    } else {
    }
    %c0 = arith.constant 0 : index
    %c0_1 = arith.constant 0 : index
    %3 = vector.load %arg10[%c0, %c0_1] : memref<16x32xf32, #tpu.memory_space<vmem>>, vector<16x32xf32>
    %c0_2 = arith.constant 0 : index
    %c0_3 = arith.constant 0 : index
    %4 = vector.load %arg7[%c0_2, %c0_3] : memref<32x128xf32, #tpu.memory_space<vmem>>, vector<32x128xf32>
    %cst = arith.constant dense<0.000000e+00> : vector<16x128xf32>
    %5 = tpu.matmul %3, %4, %cst {dimension_numbers = #tpu.dot_dimension_numbers<[1], [0], [0], [1], [0, 0, 1, 1], [], []>} : vector<16x32xf32>, vector<32x128xf32>, vector<16x128xf32> -> vector<16x128xf32>
    %c0_4 = arith.constant 0 : index
    %c0_5 = arith.constant 0 : index
    %6 = vector.load %arg8[%c0_4, %c0_5] : memref<1x128xf32, #tpu.memory_space<vmem>>, vector<1x128xf32>
    %7 = vector.broadcast %6 : vector<1x128xf32> to vector<16x128xf32>
    %8 = arith.addf %5, %7 : vector<16x128xf32>
    %c0_6 = arith.constant 0 : index
    %c0_7 = arith.constant 0 : index
    %9 = vector.load %arg9[%c0_6, %c0_7] : memref<16x128xf32, #tpu.memory_space<vmem>>, vector<16x128xf32>
    tpu.vector_store %arg9[%c0_6, %c0_7], %8 {strides = array<i32>} : memref<16x128xf32, #tpu.memory_space<vmem>>, vector<16x128xf32>,
    return
  }
  func.func @transform_0(%arg0: i32, %arg1: i32) -> (i32, i32) {
    %c0_i32 = arith.constant 0 : i32
    %c0_i32_0 = arith.constant 0 : i32
    return %arg0, %c0_i32 : i32, i32
  }
  func.func @transform_1(%arg0: i32, %arg1: i32) -> (i32, i32) {
    %c0_i32 = arith.constant 0 : i32
    %c0_i32_0 = arith.constant 0 : i32
    %c0_i32_1 = arith.constant 0 : i32
    return %c0_i32, %c0_i32_0 : i32, i32
  }
  func.func @transform_2(%arg0: i32, %arg1: i32) -> (i32, i32) {
    %c0_i32 = arith.constant 0 : i32
    %c0_i32_0 = arith.constant 0 : i32
    %c0_i32_1 = arith.constant 0 : i32
    return %c0_i32, %c0_i32_0 : i32, i32
  }
  func.func @transform_3(%arg0: i32, %arg1: i32) -> (i32, i32) {
    %c0_i32 = arith.constant 0 : i32
    %c0_i32_0 = arith.constant 0 : i32
    %c0_i32_1 = arith.constant 0 : i32
    return %c0_i32, %c0_i32_0 : i32, i32
  }
  func.func @transform_4(%arg0: i32, %arg1: i32) -> (i32, i32) {
    %c0_i32 = arith.constant 0 : i32
    %c0_i32_0 = arith.constant 0 : i32
    %c0_i32_1 = arith.constant 0 : i32
    return %c0_i32, %c0_i32_0 : i32, i32
  }
  func.func @transform_5(%arg0: i32, %arg1: i32) -> (i32, i32) {
    %c0_i32 = arith.constant 0 : i32
    %c0_i32_0 = arith.constant 0 : i32
    return %c0_i32, %arg1 : i32, i32
  }
  func.func @transform_6(%arg0: i32, %arg1: i32) -> (i32, i32) {
    %c0_i32 = arith.constant 0 : i32
    %c0_i32_0 = arith.constant 0 : i32
    return %c0_i32, %arg1 : i32, i32
  }
  func.func @transform_7(%arg0: i32, %arg1: i32) -> (i32, i32) {
    %c0_i32 = arith.constant 0 : i32
    return %arg0, %arg1 : i32, i32
  }
}

module attributes {stable_mosaic.version = 11 : i64} {
  func.func @_lm_head_kernel(%arg0: i32, %arg1: i32, %arg2: memref<16x32xf32, #tpu.memory_space<vmem>>, %arg3: memref<32x32xf32, #tpu.memory_space<vmem>>, %arg4: memref<1x32xf32, #tpu.memory_space<vmem>>, %arg5: memref<1x32xf32, #tpu.memory_space<vmem>>, %arg6: memref<1x32xf32, #tpu.memory_space<vmem>>, %arg7: memref<32x128xf32, #tpu.memory_space<vmem>>, %arg8: memref<1x128xf32, #tpu.memory_space<vmem>>, %arg9: memref<16x128xf32, #tpu.memory_space<vmem>>, %arg10: memref<16x32xf32, #tpu.memory_space<vmem>>) attributes {dimension_semantics = [#tpu.dimension_semantics<parallel>, #tpu.dimension_semantics<arbitrary>], iteration_bounds = array<i64: 1, 1>, scalar_prefetch = 0 : i64, scratch_operands = 1 : i64, tpu.core_type = #tpu.core_type<tc>, window_params = [{transform_indices = @transform_0, window_bounds = array<i64: 16, 32>}, {pipeline_mode = #tpu.pipeline_mode<synchronous>, transform_indices = @transform_1, window_bounds = array<i64: 32, 32>}, {pipeline_mode = #tpu.pipeline_mode<synchronous>, transform_indices = @transform_2, window_bounds = array<i64: 1, 32>}, {pipeline_mode = #tpu.pipeline_mode<synchronous>, transform_indices = @transform_3, window_bounds = array<i64: 1, 32>}, {pipeline_mode = #tpu.pipeline_mode<synchronous>, transform_indices = @transform_4, window_bounds = array<i64: 1, 32>}, {transform_indices = @transform_5, window_bounds = array<i64: 32, 128>}, {transform_indices = @transform_6, window_bounds = array<i64: 1, 128>}, {transform_indices = @transform_7, window_bounds = array<i64: 16, 128>}]} {
    %c0_i32 = arith.constant 0 : i32
    %0 = arith.cmpi eq, %arg1, %c0_i32 : i32
    %1 = arith.extui %0 : i1 to i32
    %c0_i32_0 = arith.constant 0 : i32
    %2 = arith.cmpi ne, %1, %c0_i32_0 : i32
    scf.if %2 {
      %c0_8 = arith.constant 0 : index
      %c0_9 = arith.constant 0 : index
      %10 = vector.load %arg2[%c0_8, %c0_9] : memref<16x32xf32, #tpu.memory_space<vmem>>, vector<16x32xf32>
      %c0_10 = arith.constant 0 : index
      %c0_11 = arith.constant 0 : index
      %11 = vector.load %arg3[%c0_10, %c0_11] : memref<32x32xf32, #tpu.memory_space<vmem>>, vector<32x32xf32>
      %cst_12 = arith.constant dense<0.000000e+00> : vector<16x32xf32>
      %12 = tpu.matmul %10, %11, %cst_12 {dimension_numbers = #tpu.dot_dimension_numbers<[1], [0], [0], [1], [0, 0, 1, 1], [], []>} : vector<16x32xf32>, vector<32x32xf32>, vector<16x32xf32> -> vector<16x32xf32>
      %c0_13 = arith.constant 0 : index
      %c0_14 = arith.constant 0 : index
      %13 = vector.load %arg4[%c0_13, %c0_14] : memref<1x32xf32, #tpu.memory_space<vmem>>, vector<1x32xf32>
      %14 = vector.broadcast %13 : vector<1x32xf32> to vector<16x32xf32>
      %15 = arith.addf %12, %14 : vector<16x32xf32>
      %cst_15 = arith.constant dense<0.000000e+00> : vector<16xf32>
      %16 = vector.multi_reduction <add>, %15, %cst_15 [1] : vector<16x32xf32> to vector<16xf32>
      %17 = vector.shape_cast %16 : vector<16xf32> to vector<16x1xf32>
      %cst_16 = arith.constant 3.200000e+01 : f32
      %18 = vector.broadcast %cst_16 : f32 to vector<16x1xf32>
      %19 = arith.divf %17, %18 : vector<16x1xf32>
      %20 = vector.broadcast %19 : vector<16x1xf32> to vector<16x32xf32>
      %21 = arith.subf %15, %20 : vector<16x32xf32>
      %22 = arith.mulf %21, %21 : vector<16x32xf32>
      %cst_17 = arith.constant dense<0.000000e+00> : vector<16xf32>
      %23 = vector.multi_reduction <add>, %22, %cst_17 [1] : vector<16x32xf32> to vector<16xf32>
      %24 = vector.shape_cast %23 : vector<16xf32> to vector<16x1xf32>
      %cst_18 = arith.constant 3.200000e+01 : f32
      %25 = vector.broadcast %cst_18 : f32 to vector<16x1xf32>
      %26 = arith.divf %24, %25 : vector<16x1xf32>
      %cst_19 = arith.constant 9.99999974E-6 : f32
      %27 = vector.broadcast %cst_19 : f32 to vector<16x1xf32>
      %28 = arith.addf %26, %27 : vector<16x1xf32>
      %29 = math.rsqrt %28 : vector<16x1xf32>
      %30 = vector.broadcast %29 : vector<16x1xf32> to vector<16x32xf32>
      %31 = arith.mulf %21, %30 : vector<16x32xf32>
      %c0_20 = arith.constant 0 : index
      %c0_21 = arith.constant 0 : index
      %32 = vector.load %arg5[%c0_20, %c0_21] : memref<1x32xf32, #tpu.memory_space<vmem>>, vector<1x32xf32>
      %33 = vector.broadcast %32 : vector<1x32xf32> to vector<16x32xf32>
      %34 = arith.mulf %31, %33 : vector<16x32xf32>
      %c0_22 = arith.constant 0 : index
      %c0_23 = arith.constant 0 : index
      %35 = vector.load %arg6[%c0_22, %c0_23] : memref<1x32xf32, #tpu.memory_space<vmem>>, vector<1x32xf32>
      %36 = vector.broadcast %35 : vector<1x32xf32> to vector<16x32xf32>
      %37 = arith.addf %34, %36 : vector<16x32xf32>
      %cst_24 = arith.constant 5.000000e-01 : f32
      %38 = vector.broadcast %cst_24 : f32 to vector<16x32xf32>
      %39 = arith.mulf %38, %37 : vector<16x32xf32>
      %cst_25 = arith.constant 0.707106769 : f32
      %40 = vector.broadcast %cst_25 : f32 to vector<16x32xf32>
      %41 = arith.mulf %37, %40 : vector<16x32xf32>
      %42 = math.erf %41 : vector<16x32xf32>
      %cst_26 = arith.constant 1.000000e+00 : f32
      %43 = vector.broadcast %cst_26 : f32 to vector<16x32xf32>
      %44 = arith.addf %43, %42 : vector<16x32xf32>
      %45 = arith.mulf %39, %44 : vector<16x32xf32>
      %c0_27 = arith.constant 0 : index
      %c0_28 = arith.constant 0 : index
      %46 = vector.load %arg10[%c0_27, %c0_28] : memref<16x32xf32, #tpu.memory_space<vmem>>, vector<16x32xf32>
      tpu.vector_store %arg10[%c0_27, %c0_28], %45 {strides = array<i32>} : memref<16x32xf32, #tpu.memory_space<vmem>>, vector<16x32xf32>,
    } else {
    }
    %c0 = arith.constant 0 : index
    %c0_1 = arith.constant 0 : index
    %3 = vector.load %arg10[%c0, %c0_1] : memref<16x32xf32, #tpu.memory_space<vmem>>, vector<16x32xf32>
    %c0_2 = arith.constant 0 : index
    %c0_3 = arith.constant 0 : index
    %4 = vector.load %arg7[%c0_2, %c0_3] : memref<32x128xf32, #tpu.memory_space<vmem>>, vector<32x128xf32>
    %cst = arith.constant dense<0.000000e+00> : vector<16x128xf32>
    %5 = tpu.matmul %3, %4, %cst {dimension_numbers = #tpu.dot_dimension_numbers<[1], [0], [0], [1], [0, 0, 1, 1], [], []>} : vector<16x32xf32>, vector<32x128xf32>, vector<16x128xf32> -> vector<16x128xf32>
    %c0_4 = arith.constant 0 : index
    %c0_5 = arith.constant 0 : index
    %6 = vector.load %arg8[%c0_4, %c0_5] : memref<1x128xf32, #tpu.memory_space<vmem>>, vector<1x128xf32>
    %7 = vector.broadcast %6 : vector<1x128xf32> to vector<16x128xf32>
    %8 = arith.addf %5, %7 : vector<16x128xf32>
    %c0_6 = arith.constant 0 : index
    %c0_7 = arith.constant 0 : index
    %9 = vector.load %arg9[%c0_6, %c0_7] : memref<16x128xf32, #tpu.memory_space<vmem>>, vector<16x128xf32>
    tpu.vector_store %arg9[%c0_6, %c0_7], %8 {strides = array<i32>} : memref<16x128xf32, #tpu.memory_space<vmem>>, vector<16x128xf32>,
    return
  }
  func.func @transform_0(%arg0: i32, %arg1: i32) -> (i32, i32) {
    %c0_i32 = arith.constant 0 : i32
    %c0_i32_0 = arith.constant 0 : i32
    return %arg0, %c0_i32 : i32, i32
  }
  func.func @transform_1(%arg0: i32, %arg1: i32) -> (i32, i32) {
    %c0_i32 = arith.constant 0 : i32
    %c0_i32_0 = arith.constant 0 : i32
    %c0_i32_1 = arith.constant 0 : i32
    return %c0_i32, %c0_i32_0 : i32, i32
  }
  func.func @transform_2(%arg0: i32, %arg1: i32) -> (i32, i32) {
    %c0_i32 = arith.constant 0 : i32
    %c0_i32_0 = arith.constant 0 : i32
    %c0_i32_1 = arith.constant 0 : i32
    return %c0_i32, %c0_i32_0 : i32, i32
  }
  func.func @transform_3(%arg0: i32, %arg1: i32) -> (i32, i32) {
    %c0_i32 = arith.constant 0 : i32
    %c0_i32_0 = arith.constant 0 : i32
    %c0_i32_1 = arith.constant 0 : i32
    return %c0_i32, %c0_i32_0 : i32, i32
  }
  func.func @transform_4(%arg0: i32, %arg1: i32) -> (i32, i32) {
    %c0_i32 = arith.constant 0 : i32
    %c0_i32_0 = arith.constant 0 : i32
    %c0_i32_1 = arith.constant 0 : i32
    return %c0_i32, %c0_i32_0 : i32, i32
  }
  func.func @transform_5(%arg0: i32, %arg1: i32) -> (i32, i32) {
    %c0_i32 = arith.constant 0 : i32
    %c0_i32_0 = arith.constant 0 : i32
    return %c0_i32, %arg1 : i32, i32
  }
  func.func @transform_6(%arg0: i32, %arg1: i32) -> (i32, i32) {
    %c0_i32 = arith.constant 0 : i32
    %c0_i32_0 = arith.constant 0 : i32
    return %c0_i32, %arg1 : i32, i32
  }
  func.func @transform_7(%arg0: i32, %arg1: i32) -> (i32, i32) {
    %c0_i32 = arith.constant 0 : i32
    return %arg0, %arg1 : i32, i32
  }
}

</mosaic_0001>

<llo_original>
// kernel: tpu_custom_call.1
$region0: #{tpu_custom_call.1}
  #allocation0 [shape = 'u32[]', space=smem, size = 0x4, offset = 0x4, fixed_abs, tag = 'smem constant byte address 0x4 - core index']
  #allocation1 [shape = 'u32[144,128]{1,0:T(1,128)}', space=vmem, size = 0x12000, scoped, tag = 'internal scratch']
  #allocation2 [shape = 'f32[16,32]{1,0:T(8,128)}', space=vmem, size = 0x2000, scoped, tag = 'scratch operand']
  %s0 = inlined_call_operand.hbm [shape: f32[16,32], index: 0, kind: input, shape index: {}]
  %s1 = inlined_call_operand.hbm [shape: f32[32,32], index: 1, kind: input, shape index: {}]
  %s2 = inlined_call_operand.vmem [shape: f32[1,32], index: 2, kind: input, shape index: {}]
  %s3 = inlined_call_operand.vmem [shape: f32[1,32], index: 3, kind: input, shape index: {}]
  %s4 = inlined_call_operand.vmem [shape: f32[1,32], index: 4, kind: input, shape index: {}]
  %s5 = inlined_call_operand.hbm [shape: f32[32,128], index: 5, kind: input, shape index: {}]
  %s6 = inlined_call_operand.vmem [shape: f32[1,128], index: 6, kind: input, shape index: {}]
  %s7 = inlined_call_operand.hbm [shape: f32[16,128], index: 7, kind: output, shape index: {}]
  %s8 = sld [smem:[#allocation0]]
  $region54: #{tpu_custom_call.1} parent=0
    _
  %s10 = ssub.s32 1, %s8
  %s11 = scalar_select 0, %s10, %s8
  $region1: #{tpu_custom_call.1} parent=0
    #allocation3 [shape = 'u8[8192]{0}', space=vmem, size = 0x2000, scoped, tag = 'input window, operand 0, single buffered']
    #allocation4 [shape = 's32[1]{0}', space=sflag, size = 0x4, scoped, tag = 'scoped memory for tpu_custom_call.1']
    #allocation5 [shape = 's32[1]{0}', space=sflag, size = 0x4, scoped, tag = 'scoped memory for tpu_custom_call.1']
    #allocation6 [shape = 'u8[16384]{0}', space=vmem, size = 0x4000, scoped, tag = 'input window, operand 1, single buffered']
    #allocation7 [shape = 's32[1]{0}', space=sflag, size = 0x4, scoped, tag = 'scoped memory for tpu_custom_call.1']
    #allocation8 [shape = 'u8[16384]{0}', space=vmem, size = 0x4000, scoped, tag = 'input window, operand 5, single buffered']
    #allocation9 [shape = 'u8[8192]{0}', space=vmem, size = 0x2000, scoped, tag = 'output window, operand 0, single buffered']
    %12 = vsyncpa [#allocation4], 0
    %13 = vsyncpa [#allocation7], 0
    %14 = vsyncpa [#allocation5], 0
    // Predicated region
    $region2: #{tpu_custom_call.1} parent=1 // pred_check
      _
    $region3: #{tpu_custom_call.1} parent=1 // pred_check_branch
      %16 = sbr.rel (0) target = $region5
    $region4: #{tpu_custom_call.1} parent=1 // pred_region
      %s18 = ssub.s32 256, 256
      %19 = vsyncadd [#allocation4], %s18
      %s20 = sshll.u32 [#allocation3], 4
      %s21 = int_to_ptr.vmem [resolvable:$true] %s20
      %26 = dma.hbm_to_vmem [thread:$0]  %s0, 256, %s21, [#allocation4], 128, 128, 8
    $region5: #{tpu_custom_call.1} parent=1 // pred_fallthru
      _
    // Predicated region
    $region6: #{tpu_custom_call.1} parent=1 // pred_check
      _
    $region7: #{tpu_custom_call.1} parent=1 // pred_check_branch
      %28 = sbr.rel (0) target = $region9
    $region8: #{tpu_custom_call.1} parent=1 // pred_region
      %s30 = ssub.s32 512, 512
      %31 = vsyncadd [#allocation7], %s30
      %s32 = sshll.u32 [#allocation6], 4
      %s33 = int_to_ptr.vmem [resolvable:$true] %s32
      %38 = dma.hbm_to_vmem [thread:$0]  %s1, 512, %s33, [#allocation7], 128, 128, 8
    $region9: #{tpu_custom_call.1} parent=1 // pred_fallthru
      _
    // Predicated region
    $region10: #{tpu_custom_call.1} parent=1 // pred_check
      _
    $region11: #{tpu_custom_call.1} parent=1 // pred_check_branch
      %40 = sbr.rel (0) target = $region13
    $region12: #{tpu_custom_call.1} parent=1 // pred_region
      _
    $region13: #{tpu_custom_call.1} parent=1 // pred_fallthru
      _
    // Predicated region
    $region14: #{tpu_custom_call.1} parent=1 // pred_check
      _
    $region15: #{tpu_custom_call.1} parent=1 // pred_check_branch
      %42 = sbr.rel (0) target = $region17
    $region16: #{tpu_custom_call.1} parent=1 // pred_region
      _
    $region17: #{tpu_custom_call.1} parent=1 // pred_fallthru
      _
    // Predicated region
    $region18: #{tpu_custom_call.1} parent=1 // pred_check
      _
    $region19: #{tpu_custom_call.1} parent=1 // pred_check_branch
      %44 = sbr.rel (0) target = $region21
    $region20: #{tpu_custom_call.1} parent=1 // pred_region
      _
    $region21: #{tpu_custom_call.1} parent=1 // pred_fallthru
      _
    // Predicated region
    $region22: #{tpu_custom_call.1} parent=1 // pred_check
      _
    $region23: #{tpu_custom_call.1} parent=1 // pred_check_branch
      %46 = sbr.rel (0) target = $region25
    $region24: #{tpu_custom_call.1} parent=1 // pred_region
      %s48 = ssub.s32 512, 512
      %49 = vsyncadd [#allocation7], %s48
      %s50 = sshll.u32 [#allocation8], 4
      %s51 = int_to_ptr.vmem [resolvable:$true] %s50
      %56 = dma.hbm_to_vmem [thread:$0]  %s5, 512, %s51, [#allocation7], 128, 128, 8
    $region25: #{tpu_custom_call.1} parent=1 // pred_fallthru
      _
    // Predicated region
    $region26: #{tpu_custom_call.1} parent=1 // pred_check
      _
    $region27: #{tpu_custom_call.1} parent=1 // pred_check_branch
      %58 = sbr.rel (0) target = $region29
    $region28: #{tpu_custom_call.1} parent=1 // pred_region
      _
    $region29: #{tpu_custom_call.1} parent=1 // pred_fallthru
      _
    // Predicated region
    $region30: #{tpu_custom_call.1} parent=1 // pred_check
      _
    $region31: #{tpu_custom_call.1} parent=1 // pred_check_branch
      %60 = sbr.rel (0) target = $region33
    $region32: #{tpu_custom_call.1} parent=1 // pred_region
      %61 = dma.done [#allocation4], 256
    $region33: #{tpu_custom_call.1} parent=1 // pred_fallthru
      _
    // Predicated region
    $region34: #{tpu_custom_call.1} parent=1 // pred_check
      _
    $region35: #{tpu_custom_call.1} parent=1 // pred_check_branch
      %63 = sbr.rel (0) target = $region37
    $region36: #{tpu_custom_call.1} parent=1 // pred_region
      %64 = dma.done [#allocation7], 512
    $region37: #{tpu_custom_call.1} parent=1 // pred_fallthru
      _
    // Predicated region
    $region38: #{tpu_custom_call.1} parent=1 // pred_check
      _
    $region39: #{tpu_custom_call.1} parent=1 // pred_check_branch
      %66 = sbr.rel (0) target = $region41
    $region40: #{tpu_custom_call.1} parent=1 // pred_region
      %67 = dma.done [#allocation7], 512
    $region41: #{tpu_custom_call.1} parent=1 // pred_fallthru
      _
    %p68 = scmp.eq.s32.totalorder 0, 0
    // Predicated region
    $region42: #{tpu_custom_call.1} parent=1 // pred_check
      %p69 = pneg %p68
    $region43: #{tpu_custom_call.1} parent=1 // pred_check_branch
      %71 = sbr.rel (%p69) target = $region45
    $region44: #{tpu_custom_call.1} parent=1 // pred_region
      %v72 = vld [vmem:[#allocation3] sm:$0xff]
      %v73 = vld [vmem:[#allocation3 + $0x8] sm:$0xff]
      %v74 = vld [vmem:[#allocation6] sm:$0xff]
      %v75 = vld [vmem:[#allocation6 + $0x8] sm:$0xff]
      %v76 = vld [vmem:[#allocation6 + $0x10] sm:$0xff]
      %v77 = vld [vmem:[#allocation6 + $0x18] sm:$0xff]
      %v78 = vld [vmem:[%s2] sm:$0x1]
      %v80 = vlaneseq
      %v81 = vshrl.u32 %v80, 7
      %v82 = vsub.s32 0, %v81
      %v83 = vrot.slane %v78, %v82
      %vm85 = vcmask 261120
      %v87 = vsel %vm85, %v72, 0
      %v90 = vsel %vm85, %v73, 0
      %92 = vmatprep.subr.mxu0 0.0
      %93 = vmatpush1.msra.mxu0 0.0
      %94 = vmatprep.subr.mxu0 0.0
      %95 = vmatpush1.msra.mxu0 0.0
      %96 = vmatprep.subr.mxu0 0.0
      %97 = vmatpush1.msra.mxu0 0.0
      %98 = vmatprep.subr.mxu0 0.0
      %99 = vmatpush1.msra.mxu0 0.0
      %100 = vmatprep.subr.mxu0 0.0
      %101 = vmatpush1.msra.mxu0 0.0
      %102 = vmatprep.subr.mxu0 0.0
      %103 = vmatpush1.msra.mxu0 0.0
      %104 = vmatprep.subr.mxu0 0.0
      %105 = vmatpush1.msra.mxu0 0.0
      %106 = vmatprep.subr.mxu0 0.0
      %107 = vmatpush1.msra.mxu0 0.0
      %108 = vmatprep.subr.mxu0 0.0
      %109 = vmatpush1.msra.mxu0 0.0
      %110 = vmatprep.subr.mxu0 0.0
      %111 = vmatpush1.msra.mxu0 0.0
      %112 = vmatprep.subr.mxu0 0.0
      %113 = vmatpush1.msra.mxu0 0.0
      %114 = vmatprep.subr.mxu0 0.0
      %115 = vmatpush1.msra.mxu0 0.0
      %116 = vmatprep.subr.mxu0 0.0
      %117 = vmatpush1.msra.mxu0 %v77
      %118 = vmatprep.subr.mxu0 0.0
      %119 = vmatpush1.msra.mxu0 %v76
      %120 = vmatprep.subr.mxu0 0.0
      %121 = vmatpush1.msra.mxu0 %v75
      %122 = vmatprep.subr.mxu0 0.0
      %123 = vmatpush1.msra.mxu0 %v74
      %124 = vmatprep.subr.mxu0 0.0
      %125 = vmatpush2.msra.mxu0 0.0
      %126 = vmatprep.subr.mxu0 0.0
      %127 = vmatpush2.msra.mxu0 0.0
      %128 = vmatprep.subr.mxu0 0.0
      %129 = vmatpush2.msra.mxu0 0.0
      %130 = vmatprep.subr.mxu0 0.0
      %131 = vmatpush2.msra.mxu0 0.0
      %132 = vmatprep.subr.mxu0 0.0
      %133 = vmatpush2.msra.mxu0 0.0
      %134 = vmatprep.subr.mxu0 0.0
      %135 = vmatpush2.msra.mxu0 0.0
      %136 = vmatprep.subr.mxu0 0.0
      %137 = vmatpush2.msra.mxu0 0.0
      %138 = vmatprep.subr.mxu0 0.0
      %139 = vmatpush2.msra.mxu0 0.0
      %140 = vmatprep.subr.mxu0 0.0
      %141 = vmatpush2.msra.mxu0 0.0
      %142 = vmatprep.subr.mxu0 0.0
      %143 = vmatpush2.msra.mxu0 0.0
      %144 = vmatprep.subr.mxu0 0.0
      %145 = vmatpush2.msra.mxu0 0.0
      %146 = vmatprep.subr.mxu0 0.0
      %147 = vmatpush2.msra.mxu0 0.0
      %148 = vmatprep.subr.mxu0 0.0
      %149 = vmatpush2.msra.mxu0 0.0
      %150 = vmatprep.subr.mxu0 0.0
      %151 = vmatpush2.msra.mxu0 0.0
      %152 = vmatprep.subr.mxu0 0.0
      %153 = vmatpush2.msra.mxu0 0.0
      %154 = vmatprep.subr.mxu0 0.0
      %155 = vmatpush2.msra.mxu0 0.0
      %156 = vmatprep.mubr.f32.mxu0 0.0
      %157 = vmatmul.mubr.f32.gmra.mxu0 %v87
      %v158 = vpop.f32.mrf.mxu0
      %v159 = vadd.f32 %v83, %v158
      %v160 = vpop.f32.mrf.mxu0
      %161 = vmatprep.mubr.f32.mxu0 0.0
      %162 = vmatmul.mubr.f32.gmra.mxu0 %v90
      %v163 = vpop.f32.mrf.mxu0
      %v164 = vadd.f32 %v83, %v163
      %v165 = vpop.f32.mrf.mxu0
      %166 = vdwg.mxu0
      %v167 = vsel %vm85, %v159, 0.0
      %168 = vadd.xlane.f32.xlu0 %v167
      %v169 = vpop.xlane.xlu0 %168
      %v170 = vsel %vm85, %v164, 0.0
      %171 = vadd.xlane.f32.xlu0 %v170
      %v172 = vpop.xlane.xlu0 %171
      %v173 = vrcp.pop 32.0
      %v174 = vmul.f32 %v169, %v173
      %v175 = vmul.f32 %v172, %v173
      %v176 = vsub.f32 %v159, %v174
      %v177 = vsub.f32 %v164, %v175
      %v178 = vmul.f32 %v176, %v176
      %v179 = vmul.f32 %v177, %v177
      %v180 = vsel %vm85, %v178, 0.0
      %181 = vadd.xlane.f32.xlu0 %v180
      %v182 = vpop.xlane.xlu0 %181
      %v183 = vsel %vm85, %v179, 0.0
      %184 = vadd.xlane.f32.xlu0 %v183
      %v185 = vpop.xlane.xlu0 %184
      %v186 = vmul.f32 %v182, %v173
      %v187 = vmul.f32 %v185, %v173
      %v188 = vadd.f32 %v186, 1e-05
      %v189 = vadd.f32 %v187, 1e-05
      %v190 = vrsqrt.pop %v188
      %v191 = vrsqrt.pop %v189
      %v192 = vmul.f32 %v176, %v190
      %v193 = vmul.f32 %v177, %v191
      %v194 = vld [vmem:[%s3] sm:$0x1]
      %v196 = vlaneseq
      %v197 = vshrl.u32 %v196, 7
      %v198 = vsub.s32 0, %v197
      %v199 = vrot.slane %v194, %v198
      %v201 = vmul.f32 %v192, %v199
      %v202 = vmul.f32 %v193, %v199
      %v203 = vld [vmem:[%s4] sm:$0x1]
      %v205 = vlaneseq
      %v206 = vshrl.u32 %v205, 7
      %v207 = vsub.s32 0, %v206
      %v208 = vrot.slane %v203, %v207
      %v210 = vadd.f32 %v201, %v208
      %v211 = vadd.f32 %v202, %v208
      %v212 = vmul.f32 %v210, 0.5
      %v213 = vmul.f32 %v211, 0.5
      %v214 = vmul.f32 %v210, 0.70710677
      %v215 = vmul.f32 %v211, 0.70710677
      %v216 = verf.f32.pop %v214
      %v217 = verf.f32.pop %v215
      %v218 = vadd.f32 %v216, 1.0
      %v219 = vadd.f32 %v217, 1.0
      %v220 = vmul.f32 %v212, %v218
      %v221 = vmul.f32 %v213, %v219
      %222 = vst.msk [vmem:[#allocation2] sm:$0xff] %vm85, %v220
      %223 = vst.msk [vmem:[#allocation2 + $0x8] sm:$0xff] %vm85, %v221
    $region45: #{tpu_custom_call.1} parent=1 // pred_fallthru
      _
    %v224 = vld [vmem:[#allocation2] sm:$0xff]
    %v225 = vld [vmem:[#allocation2 + $0x8] sm:$0xff]
    %v226 = vld [vmem:[#allocation8] sm:$0xff]
    %v227 = vld [vmem:[#allocation8 + $0x8] sm:$0xff]
    %v228 = vld [vmem:[#allocation8 + $0x10] sm:$0xff]
    %v229 = vld [vmem:[#allocation8 + $0x18] sm:$0xff]
    %v230 = vld [vmem:[%s6] sm:$0x1]
    %v232 = vlaneseq
    %v233 = vshrl.u32 %v232, 7
    %v234 = vsub.s32 0, %v233
    %v235 = vrot.slane %v230, %v234
    %vm237 = vcmask 261120
    %v239 = vsel %vm237, %v224, 0
    %v242 = vsel %vm237, %v225, 0
    %244 = vmatprep.subr.mxu0 0.0
    %245 = vmatpush1.msra.mxu0 0.0
    %246 = vmatprep.subr.mxu0 0.0
    %247 = vmatpush1.msra.mxu0 0.0
    %248 = vmatprep.subr.mxu0 0.0
    %249 = vmatpush1.msra.mxu0 0.0
    %250 = vmatprep.subr.mxu0 0.0
    %251 = vmatpush1.msra.mxu0 0.0
    %252 = vmatprep.subr.mxu0 0.0
    %253 = vmatpush1.msra.mxu0 0.0
    %254 = vmatprep.subr.mxu0 0.0
    %255 = vmatpush1.msra.mxu0 0.0
    %256 = vmatprep.subr.mxu0 0.0
    %257 = vmatpush1.msra.mxu0 0.0
    %258 = vmatprep.subr.mxu0 0.0
    %259 = vmatpush1.msra.mxu0 0.0
    %260 = vmatprep.subr.mxu0 0.0
    %261 = vmatpush1.msra.mxu0 0.0
    %262 = vmatprep.subr.mxu0 0.0
    %263 = vmatpush1.msra.mxu0 0.0
    %264 = vmatprep.subr.mxu0 0.0
    %265 = vmatpush1.msra.mxu0 0.0
    %266 = vmatprep.subr.mxu0 0.0
    %267 = vmatpush1.msra.mxu0 0.0
    %268 = vmatprep.subr.mxu0 0.0
    %269 = vmatpush1.msra.mxu0 %v229
    %270 = vmatprep.subr.mxu0 0.0
    %271 = vmatpush1.msra.mxu0 %v228
    %272 = vmatprep.subr.mxu0 0.0
    %273 = vmatpush1.msra.mxu0 %v227
    %274 = vmatprep.subr.mxu0 0.0
    %275 = vmatpush1.msra.mxu0 %v226
    %276 = vmatprep.subr.mxu0 0.0
    %277 = vmatpush2.msra.mxu0 0.0
    %278 = vmatprep.subr.mxu0 0.0
    %279 = vmatpush2.msra.mxu0 0.0
    %280 = vmatprep.subr.mxu0 0.0
    %281 = vmatpush2.msra.mxu0 0.0
    %282 = vmatprep.subr.mxu0 0.0
    %283 = vmatpush2.msra.mxu0 0.0
    %284 = vmatprep.subr.mxu0 0.0
    %285 = vmatpush2.msra.mxu0 0.0
    %286 = vmatprep.subr.mxu0 0.0
    %287 = vmatpush2.msra.mxu0 0.0
    %288 = vmatprep.subr.mxu0 0.0
    %289 = vmatpush2.msra.mxu0 0.0
    %290 = vmatprep.subr.mxu0 0.0
    %291 = vmatpush2.msra.mxu0 0.0
    %292 = vmatprep.subr.mxu0 0.0
    %293 = vmatpush2.msra.mxu0 0.0
    %294 = vmatprep.subr.mxu0 0.0
    %295 = vmatpush2.msra.mxu0 0.0
    %296 = vmatprep.subr.mxu0 0.0
    %297 = vmatpush2.msra.mxu0 0.0
    %298 = vmatprep.subr.mxu0 0.0
    %299 = vmatpush2.msra.mxu0 0.0
    %300 = vmatprep.subr.mxu0 0.0
    %301 = vmatpush2.msra.mxu0 0.0
    %302 = vmatprep.subr.mxu0 0.0
    %303 = vmatpush2.msra.mxu0 0.0
    %304 = vmatprep.subr.mxu0 0.0
    %305 = vmatpush2.msra.mxu0 0.0
    %306 = vmatprep.subr.mxu0 0.0
    %307 = vmatpush2.msra.mxu0 0.0
    %308 = vmatprep.mubr.f32.mxu0 0.0
    %309 = vmatmul.mubr.f32.gmra.mxu0 %v239
    %v310 = vpop.f32.mrf.mxu0
    %v311 = vadd.f32 %v235, %v310
    %v312 = vpop.f32.mrf.mxu0
    %313 = vmatprep.mubr.f32.mxu0 0.0
    %314 = vmatmul.mubr.f32.gmra.mxu0 %v242
    %v315 = vpop.f32.mrf.mxu0
    %v316 = vadd.f32 %v235, %v315
    %v317 = vpop.f32.mrf.mxu0
    %318 = vdwg.mxu0
    %319 = vst [vmem:[#allocation9] sm:$0xff] %v311
    %320 = vst [vmem:[#allocation9 + $0x8] sm:$0xff] %v316
    // Predicated region
    $region46: #{tpu_custom_call.1} parent=1 // pred_check
      _
    $region47: #{tpu_custom_call.1} parent=1 // pred_check_branch
      %322 = sbr.rel (0) target = $region49
    $region48: #{tpu_custom_call.1} parent=1 // pred_region
      %s324 = ssub.s32 256, 256
      %325 = vsyncadd [#allocation5], %s324
      %s326 = sshll.u32 [#allocation9], 4
      %s327 = int_to_ptr.vmem [resolvable:$true] %s326
      %332 = dma.vmem_to_hbm [thread:$0]  %s327, 256, %s7, [#allocation5], 128, 128, 8
    $region49: #{tpu_custom_call.1} parent=1 // pred_fallthru
      _
    // Predicated region
    $region50: #{tpu_custom_call.1} parent=1 // pred_check
      _
    $region51: #{tpu_custom_call.1} parent=1 // pred_check_branch
      %334 = sbr.rel (0) target = $region53
    $region52: #{tpu_custom_call.1} parent=1 // pred_region
      %335 = dma.done [#allocation5], 256
    $region53: #{tpu_custom_call.1} parent=1 // pred_fallthru
      _
    %336 = vsyncpa [#allocation4], 1
    %337 = vsyncpa [#allocation7], 1
    %338 = vsyncpa [#allocation5], 1

// kernel: tpu_custom_call.1
$region0: #{tpu_custom_call.1}
  #allocation0 [shape = 'u32[]', space=smem, size = 0x4, offset = 0x4, fixed_abs, tag = 'smem constant byte address 0x4 - core index']
  #allocation1 [shape = 'u32[144,128]{1,0:T(1,128)}', space=vmem, size = 0x12000, scoped, tag = 'internal scratch']
  #allocation2 [shape = 'f32[16,32]{1,0:T(8,128)}', space=vmem, size = 0x2000, scoped, tag = 'scratch operand']
  %s0 = inlined_call_operand.hbm [shape: f32[16,32], index: 0, kind: input, shape index: {}]
  %s1 = inlined_call_operand.hbm [shape: f32[32,32], index: 1, kind: input, shape index: {}]
  %s2 = inlined_call_operand.vmem [shape: f32[1,32], index: 2, kind: input, shape index: {}]
  %s3 = inlined_call_operand.vmem [shape: f32[1,32], index: 3, kind: input, shape index: {}]
  %s4 = inlined_call_operand.vmem [shape: f32[1,32], index: 4, kind: input, shape index: {}]
  %s5 = inlined_call_operand.hbm [shape: f32[32,128], index: 5, kind: input, shape index: {}]
  %s6 = inlined_call_operand.vmem [shape: f32[1,128], index: 6, kind: input, shape index: {}]
  %s7 = inlined_call_operand.hbm [shape: f32[16,128], index: 7, kind: output, shape index: {}]
  %s8 = sld [smem:[#allocation0]]
  $region54: #{tpu_custom_call.1} parent=0
    _
  %s10 = ssub.s32 1, %s8
  %s11 = scalar_select 0, %s10, %s8
  $region1: #{tpu_custom_call.1} parent=0
    #allocation3 [shape = 'u8[8192]{0}', space=vmem, size = 0x2000, scoped, tag = 'input window, operand 0, single buffered']
    #allocation4 [shape = 's32[1]{0}', space=sflag, size = 0x4, scoped, tag = 'scoped memory for tpu_custom_call.1']
    #allocation5 [shape = 's32[1]{0}', space=sflag, size = 0x4, scoped, tag = 'scoped memory for tpu_custom_call.1']
    #allocation6 [shape = 'u8[16384]{0}', space=vmem, size = 0x4000, scoped, tag = 'input window, operand 1, single buffered']
    #allocation7 [shape = 's32[1]{0}', space=sflag, size = 0x4, scoped, tag = 'scoped memory for tpu_custom_call.1']
    #allocation8 [shape = 'u8[16384]{0}', space=vmem, size = 0x4000, scoped, tag = 'input window, operand 5, single buffered']
    #allocation9 [shape = 'u8[8192]{0}', space=vmem, size = 0x2000, scoped, tag = 'output window, operand 0, single buffered']
    %12 = vsyncpa [#allocation4], 0
    %13 = vsyncpa [#allocation7], 0
    %14 = vsyncpa [#allocation5], 0
    // Predicated region
    $region2: #{tpu_custom_call.1} parent=1 // pred_check
      _
    $region3: #{tpu_custom_call.1} parent=1 // pred_check_branch
      %16 = sbr.rel (0) target = $region5
    $region4: #{tpu_custom_call.1} parent=1 // pred_region
      %s18 = ssub.s32 256, 256
      %19 = vsyncadd [#allocation4], %s18
      %s20 = sshll.u32 [#allocation3], 4
      %s21 = int_to_ptr.vmem [resolvable:$true] %s20
      %26 = dma.hbm_to_vmem [thread:$0]  %s0, 256, %s21, [#allocation4], 128, 128, 8
    $region5: #{tpu_custom_call.1} parent=1 // pred_fallthru
      _
    // Predicated region
    $region6: #{tpu_custom_call.1} parent=1 // pred_check
      _
    $region7: #{tpu_custom_call.1} parent=1 // pred_check_branch
      %28 = sbr.rel (0) target = $region9
    $region8: #{tpu_custom_call.1} parent=1 // pred_region
      %s30 = ssub.s32 512, 512
      %31 = vsyncadd [#allocation7], %s30
      %s32 = sshll.u32 [#allocation6], 4
      %s33 = int_to_ptr.vmem [resolvable:$true] %s32
      %38 = dma.hbm_to_vmem [thread:$0]  %s1, 512, %s33, [#allocation7], 128, 128, 8
    $region9: #{tpu_custom_call.1} parent=1 // pred_fallthru
      _
    // Predicated region
    $region10: #{tpu_custom_call.1} parent=1 // pred_check
      _
    $region11: #{tpu_custom_call.1} parent=1 // pred_check_branch
      %40 = sbr.rel (0) target = $region13
    $region12: #{tpu_custom_call.1} parent=1 // pred_region
      _
    $region13: #{tpu_custom_call.1} parent=1 // pred_fallthru
      _
    // Predicated region
    $region14: #{tpu_custom_call.1} parent=1 // pred_check
      _
    $region15: #{tpu_custom_call.1} parent=1 // pred_check_branch
      %42 = sbr.rel (0) target = $region17
    $region16: #{tpu_custom_call.1} parent=1 // pred_region
      _
    $region17: #{tpu_custom_call.1} parent=1 // pred_fallthru
      _
    // Predicated region
    $region18: #{tpu_custom_call.1} parent=1 // pred_check
      _
    $region19: #{tpu_custom_call.1} parent=1 // pred_check_branch
      %44 = sbr.rel (0) target = $region21
    $region20: #{tpu_custom_call.1} parent=1 // pred_region
      _
    $region21: #{tpu_custom_call.1} parent=1 // pred_fallthru
      _
    // Predicated region
    $region22: #{tpu_custom_call.1} parent=1 // pred_check
      _
    $region23: #{tpu_custom_call.1} parent=1 // pred_check_branch
      %46 = sbr.rel (0) target = $region25
    $region24: #{tpu_custom_call.1} parent=1 // pred_region
      %s48 = ssub.s32 512, 512
      %49 = vsyncadd [#allocation7], %s48
      %s50 = sshll.u32 [#allocation8], 4
      %s51 = int_to_ptr.vmem [resolvable:$true] %s50
      %56 = dma.hbm_to_vmem [thread:$0]  %s5, 512, %s51, [#allocation7], 128, 128, 8
    $region25: #{tpu_custom_call.1} parent=1 // pred_fallthru
      _
    // Predicated region
    $region26: #{tpu_custom_call.1} parent=1 // pred_check
      _
    $region27: #{tpu_custom_call.1} parent=1 // pred_check_branch
      %58 = sbr.rel (0) target = $region29
    $region28: #{tpu_custom_call.1} parent=1 // pred_region
      _
    $region29: #{tpu_custom_call.1} parent=1 // pred_fallthru
      _
    // Predicated region
    $region30: #{tpu_custom_call.1} parent=1 // pred_check
      _
    $region31: #{tpu_custom_call.1} parent=1 // pred_check_branch
      %60 = sbr.rel (0) target = $region33
    $region32: #{tpu_custom_call.1} parent=1 // pred_region
      %61 = dma.done [#allocation4], 256
    $region33: #{tpu_custom_call.1} parent=1 // pred_fallthru
      _
    // Predicated region
    $region34: #{tpu_custom_call.1} parent=1 // pred_check
      _
    $region35: #{tpu_custom_call.1} parent=1 // pred_check_branch
      %63 = sbr.rel (0) target = $region37
    $region36: #{tpu_custom_call.1} parent=1 // pred_region
      %64 = dma.done [#allocation7], 512
    $region37: #{tpu_custom_call.1} parent=1 // pred_fallthru
      _
    // Predicated region
    $region38: #{tpu_custom_call.1} parent=1 // pred_check
      _
    $region39: #{tpu_custom_call.1} parent=1 // pred_check_branch
      %66 = sbr.rel (0) target = $region41
    $region40: #{tpu_custom_call.1} parent=1 // pred_region
      %67 = dma.done [#allocation7], 512
    $region41: #{tpu_custom_call.1} parent=1 // pred_fallthru
      _
    %p68 = scmp.eq.s32.totalorder 0, 0
    // Predicated region
    $region42: #{tpu_custom_call.1} parent=1 // pred_check
      %p69 = pneg %p68
    $region43: #{tpu_custom_call.1} parent=1 // pred_check_branch
      %71 = sbr.rel (%p69) target = $region45
    $region44: #{tpu_custom_call.1} parent=1 // pred_region
      %v72 = vld [vmem:[#allocation3] sm:$0xff]
      %v73 = vld [vmem:[#allocation3 + $0x8] sm:$0xff]
      %v74 = vld [vmem:[#allocation6] sm:$0xff]
      %v75 = vld [vmem:[#allocation6 + $0x8] sm:$0xff]
      %v76 = vld [vmem:[#allocation6 + $0x10] sm:$0xff]
      %v77 = vld [vmem:[#allocation6 + $0x18] sm:$0xff]
      %v78 = vld [vmem:[%s2] sm:$0x1]
      %v80 = vlaneseq
      %v81 = vshrl.u32 %v80, 7
      %v82 = vsub.s32 0, %v81
      %v83 = vrot.slane %v78, %v82
      %vm85 = vcmask 261120
      %v87 = vsel %vm85, %v72, 0
      %v90 = vsel %vm85, %v73, 0
      %92 = vmatprep.subr.mxu0 0.0
      %93 = vmatpush1.msra.mxu0 0.0
      %94 = vmatprep.subr.mxu0 0.0
      %95 = vmatpush1.msra.mxu0 0.0
      %96 = vmatprep.subr.mxu0 0.0
      %97 = vmatpush1.msra.mxu0 0.0
      %98 = vmatprep.subr.mxu0 0.0
      %99 = vmatpush1.msra.mxu0 0.0
      %100 = vmatprep.subr.mxu0 0.0
      %101 = vmatpush1.msra.mxu0 0.0
      %102 = vmatprep.subr.mxu0 0.0
      %103 = vmatpush1.msra.mxu0 0.0
      %104 = vmatprep.subr.mxu0 0.0
      %105 = vmatpush1.msra.mxu0 0.0
      %106 = vmatprep.subr.mxu0 0.0
      %107 = vmatpush1.msra.mxu0 0.0
      %108 = vmatprep.subr.mxu0 0.0
      %109 = vmatpush1.msra.mxu0 0.0
      %110 = vmatprep.subr.mxu0 0.0
      %111 = vmatpush1.msra.mxu0 0.0
      %112 = vmatprep.subr.mxu0 0.0
      %113 = vmatpush1.msra.mxu0 0.0
      %114 = vmatprep.subr.mxu0 0.0
      %115 = vmatpush1.msra.mxu0 0.0
      %116 = vmatprep.subr.mxu0 0.0
      %117 = vmatpush1.msra.mxu0 %v77
      %118 = vmatprep.subr.mxu0 0.0
      %119 = vmatpush1.msra.mxu0 %v76
      %120 = vmatprep.subr.mxu0 0.0
      %121 = vmatpush1.msra.mxu0 %v75
      %122 = vmatprep.subr.mxu0 0.0
      %123 = vmatpush1.msra.mxu0 %v74
      %124 = vmatprep.subr.mxu0 0.0
      %125 = vmatpush2.msra.mxu0 0.0
      %126 = vmatprep.subr.mxu0 0.0
      %127 = vmatpush2.msra.mxu0 0.0
      %128 = vmatprep.subr.mxu0 0.0
      %129 = vmatpush2.msra.mxu0 0.0
      %130 = vmatprep.subr.mxu0 0.0
      %131 = vmatpush2.msra.mxu0 0.0
      %132 = vmatprep.subr.mxu0 0.0
      %133 = vmatpush2.msra.mxu0 0.0
      %134 = vmatprep.subr.mxu0 0.0
      %135 = vmatpush2.msra.mxu0 0.0
      %136 = vmatprep.subr.mxu0 0.0
      %137 = vmatpush2.msra.mxu0 0.0
      %138 = vmatprep.subr.mxu0 0.0
      %139 = vmatpush2.msra.mxu0 0.0
      %140 = vmatprep.subr.mxu0 0.0
      %141 = vmatpush2.msra.mxu0 0.0
      %142 = vmatprep.subr.mxu0 0.0
      %143 = vmatpush2.msra.mxu0 0.0
      %144 = vmatprep.subr.mxu0 0.0
      %145 = vmatpush2.msra.mxu0 0.0
      %146 = vmatprep.subr.mxu0 0.0
      %147 = vmatpush2.msra.mxu0 0.0
      %148 = vmatprep.subr.mxu0 0.0
      %149 = vmatpush2.msra.mxu0 0.0
      %150 = vmatprep.subr.mxu0 0.0
      %151 = vmatpush2.msra.mxu0 0.0
      %152 = vmatprep.subr.mxu0 0.0
      %153 = vmatpush2.msra.mxu0 0.0
      %154 = vmatprep.subr.mxu0 0.0
      %155 = vmatpush2.msra.mxu0 0.0
      %156 = vmatprep.mubr.f32.mxu0 0.0
      %157 = vmatmul.mubr.f32.gmra.mxu0 %v87
      %v158 = vpop.f32.mrf.mxu0
      %v159 = vadd.f32 %v83, %v158
      %v160 = vpop.f32.mrf.mxu0
      %161 = vmatprep.mubr.f32.mxu0 0.0
      %162 = vmatmul.mubr.f32.gmra.mxu0 %v90
      %v163 = vpop.f32.mrf.mxu0
      %v164 = vadd.f32 %v83, %v163
      %v165 = vpop.f32.mrf.mxu0
      %166 = vdwg.mxu0
      %v167 = vsel %vm85, %v159, 0.0
      %168 = vadd.xlane.f32.xlu0 %v167
      %v169 = vpop.xlane.xlu0 %168
      %v170 = vsel %vm85, %v164, 0.0
      %171 = vadd.xlane.f32.xlu0 %v170
      %v172 = vpop.xlane.xlu0 %171
      %v173 = vrcp.pop 32.0
      %v174 = vmul.f32 %v169, %v173
      %v175 = vmul.f32 %v172, %v173
      %v176 = vsub.f32 %v159, %v174
      %v177 = vsub.f32 %v164, %v175
      %v178 = vmul.f32 %v176, %v176
      %v179 = vmul.f32 %v177, %v177
      %v180 = vsel %vm85, %v178, 0.0
      %181 = vadd.xlane.f32.xlu0 %v180
      %v182 = vpop.xlane.xlu0 %181
      %v183 = vsel %vm85, %v179, 0.0
      %184 = vadd.xlane.f32.xlu0 %v183
      %v185 = vpop.xlane.xlu0 %184
      %v186 = vmul.f32 %v182, %v173
      %v187 = vmul.f32 %v185, %v173
      %v188 = vadd.f32 %v186, 1e-05
      %v189 = vadd.f32 %v187, 1e-05
      %v190 = vrsqrt.pop %v188
      %v191 = vrsqrt.pop %v189
      %v192 = vmul.f32 %v176, %v190
      %v193 = vmul.f32 %v177, %v191
      %v194 = vld [vmem:[%s3] sm:$0x1]
      %v196 = vlaneseq
      %v197 = vshrl.u32 %v196, 7
      %v198 = vsub.s32 0, %v197
      %v199 = vrot.slane %v194, %v198
      %v201 = vmul.f32 %v192, %v199
      %v202 = vmul.f32 %v193, %v199
      %v203 = vld [vmem:[%s4] sm:$0x1]
      %v205 = vlaneseq
      %v206 = vshrl.u32 %v205, 7
      %v207 = vsub.s32 0, %v206
      %v208 = vrot.slane %v203, %v207
      %v210 = vadd.f32 %v201, %v208
      %v211 = vadd.f32 %v202, %v208
      %v212 = vmul.f32 %v210, 0.5
      %v213 = vmul.f32 %v211, 0.5
      %v214 = vmul.f32 %v210, 0.70710677
      %v215 = vmul.f32 %v211, 0.70710677
      %v216 = verf.f32.pop %v214
      %v217 = verf.f32.pop %v215
      %v218 = vadd.f32 %v216, 1.0
      %v219 = vadd.f32 %v217, 1.0
      %v220 = vmul.f32 %v212, %v218
      %v221 = vmul.f32 %v213, %v219
      %222 = vst.msk [vmem:[#allocation2] sm:$0xff] %vm85, %v220
      %223 = vst.msk [vmem:[#allocation2 + $0x8] sm:$0xff] %vm85, %v221
    $region45: #{tpu_custom_call.1} parent=1 // pred_fallthru
      _
    %v224 = vld [vmem:[#allocation2] sm:$0xff]
    %v225 = vld [vmem:[#allocation2 + $0x8] sm:$0xff]
    %v226 = vld [vmem:[#allocation8] sm:$0xff]
    %v227 = vld [vmem:[#allocation8 + $0x8] sm:$0xff]
    %v228 = vld [vmem:[#allocation8 + $0x10] sm:$0xff]
    %v229 = vld [vmem:[#allocation8 + $0x18] sm:$0xff]
    %v230 = vld [vmem:[%s6] sm:$0x1]
    %v232 = vlaneseq
    %v233 = vshrl.u32 %v232, 7
    %v234 = vsub.s32 0, %v233
    %v235 = vrot.slane %v230, %v234
    %vm237 = vcmask 261120
    %v239 = vsel %vm237, %v224, 0
    %v242 = vsel %vm237, %v225, 0
    %244 = vmatprep.subr.mxu0 0.0
    %245 = vmatpush1.msra.mxu0 0.0
    %246 = vmatprep.subr.mxu0 0.0
    %247 = vmatpush1.msra.mxu0 0.0
    %248 = vmatprep.subr.mxu0 0.0
    %249 = vmatpush1.msra.mxu0 0.0
    %250 = vmatprep.subr.mxu0 0.0
    %251 = vmatpush1.msra.mxu0 0.0
    %252 = vmatprep.subr.mxu0 0.0
    %253 = vmatpush1.msra.mxu0 0.0
    %254 = vmatprep.subr.mxu0 0.0
    %255 = vmatpush1.msra.mxu0 0.0
    %256 = vmatprep.subr.mxu0 0.0
    %257 = vmatpush1.msra.mxu0 0.0
    %258 = vmatprep.subr.mxu0 0.0
    %259 = vmatpush1.msra.mxu0 0.0
    %260 = vmatprep.subr.mxu0 0.0
    %261 = vmatpush1.msra.mxu0 0.0
    %262 = vmatprep.subr.mxu0 0.0
    %263 = vmatpush1.msra.mxu0 0.0
    %264 = vmatprep.subr.mxu0 0.0
    %265 = vmatpush1.msra.mxu0 0.0
    %266 = vmatprep.subr.mxu0 0.0
    %267 = vmatpush1.msra.mxu0 0.0
    %268 = vmatprep.subr.mxu0 0.0
    %269 = vmatpush1.msra.mxu0 %v229
    %270 = vmatprep.subr.mxu0 0.0
    %271 = vmatpush1.msra.mxu0 %v228
    %272 = vmatprep.subr.mxu0 0.0
    %273 = vmatpush1.msra.mxu0 %v227
    %274 = vmatprep.subr.mxu0 0.0
    %275 = vmatpush1.msra.mxu0 %v226
    %276 = vmatprep.subr.mxu0 0.0
    %277 = vmatpush2.msra.mxu0 0.0
    %278 = vmatprep.subr.mxu0 0.0
    %279 = vmatpush2.msra.mxu0 0.0
    %280 = vmatprep.subr.mxu0 0.0
    %281 = vmatpush2.msra.mxu0 0.0
    %282 = vmatprep.subr.mxu0 0.0
    %283 = vmatpush2.msra.mxu0 0.0
    %284 = vmatprep.subr.mxu0 0.0
    %285 = vmatpush2.msra.mxu0 0.0
    %286 = vmatprep.subr.mxu0 0.0
    %287 = vmatpush2.msra.mxu0 0.0
    %288 = vmatprep.subr.mxu0 0.0
    %289 = vmatpush2.msra.mxu0 0.0
    %290 = vmatprep.subr.mxu0 0.0
    %291 = vmatpush2.msra.mxu0 0.0
    %292 = vmatprep.subr.mxu0 0.0
    %293 = vmatpush2.msra.mxu0 0.0
    %294 = vmatprep.subr.mxu0 0.0
    %295 = vmatpush2.msra.mxu0 0.0
    %296 = vmatprep.subr.mxu0 0.0
    %297 = vmatpush2.msra.mxu0 0.0
    %298 = vmatprep.subr.mxu0 0.0
    %299 = vmatpush2.msra.mxu0 0.0
    %300 = vmatprep.subr.mxu0 0.0
    %301 = vmatpush2.msra.mxu0 0.0
    %302 = vmatprep.subr.mxu0 0.0
    %303 = vmatpush2.msra.mxu0 0.0
    %304 = vmatprep.subr.mxu0 0.0
    %305 = vmatpush2.msra.mxu0 0.0
    %306 = vmatprep.subr.mxu0 0.0
    %307 = vmatpush2.msra.mxu0 0.0
    %308 = vmatprep.mubr.f32.mxu0 0.0
    %309 = vmatmul.mubr.f32.gmra.mxu0 %v239
    %v310 = vpop.f32.mrf.mxu0
    %v311 = vadd.f32 %v235, %v310
    %v312 = vpop.f32.mrf.mxu0
    %313 = vmatprep.mubr.f32.mxu0 0.0
    %314 = vmatmul.mubr.f32.gmra.mxu0 %v242
    %v315 = vpop.f32.mrf.mxu0
    %v316 = vadd.f32 %v235, %v315
    %v317 = vpop.f32.mrf.mxu0
    %318 = vdwg.mxu0
    %319 = vst [vmem:[#allocation9] sm:$0xff] %v311
    %320 = vst [vmem:[#allocation9 + $0x8] sm:$0xff] %v316
    // Predicated region
    $region46: #{tpu_custom_call.1} parent=1 // pred_check
      _
    $region47: #{tpu_custom_call.1} parent=1 // pred_check_branch
      %322 = sbr.rel (0) target = $region49
    $region48: #{tpu_custom_call.1} parent=1 // pred_region
      %s324 = ssub.s32 256, 256
      %325 = vsyncadd [#allocation5], %s324
      %s326 = sshll.u32 [#allocation9], 4
      %s327 = int_to_ptr.vmem [resolvable:$true] %s326
      %332 = dma.vmem_to_hbm [thread:$0]  %s327, 256, %s7, [#allocation5], 128, 128, 8
    $region49: #{tpu_custom_call.1} parent=1 // pred_fallthru
      _
    // Predicated region
    $region50: #{tpu_custom_call.1} parent=1 // pred_check
      _
    $region51: #{tpu_custom_call.1} parent=1 // pred_check_branch
      %334 = sbr.rel (0) target = $region53
    $region52: #{tpu_custom_call.1} parent=1 // pred_region
      %335 = dma.done [#allocation5], 256
    $region53: #{tpu_custom_call.1} parent=1 // pred_fallthru
      _
    %336 = vsyncpa [#allocation4], 1
    %337 = vsyncpa [#allocation7], 1
    %338 = vsyncpa [#allocation5], 1

</llo_original>
